<compile_context>
chip_gen: v7x
topology: tpu7x:2x2x1
jax: 0.10.0
libtpu: 0.0.40
codegen_flags: <defaults>
</compile_context>

<pallas_src>
import jax
import jax.numpy as jnp
from jax import lax
from jax.experimental import pallas as pl
from jax.experimental.pallas import tpu as pltpu

LANE = 128
SUBLANE = 8
MAX_BLOCK_ROWS = 8192            # 8192x128 f32 = 4 MiB per input block
NUM_SPLITS = 2                   # leading "parallel" axis (v7x: one per TensorCore)
VMEM_LIMIT_BYTES = 32 * 1024 * 1024


def _round_up(x, m):
    return (x + m - 1) // m * m


def _make_precision_kernel(threshold, block_rows, blocks_per_split, n_blocks,
                           valid_in_last, need_mask):
    thr = float(threshold)
    last_g = n_blocks - 1

    def kernel(pr_ref, gt_ref, tp_out_ref, pr_out_ref, tp_acc, pr_acc):
        c = pl.program_id(0)                  # split (core) index
        i = pl.program_id(1)                  # block index within the split
        g = c * blocks_per_split + i          # global block index

        @pl.when(i == 0)
        def _init():
            tp_acc[...] = jnp.zeros_like(tp_acc)
            pr_acc[...] = jnp.zeros_like(pr_acc)

        # Threshold compare in the input's native dtype (no full-block f32 cast).
        pr = pr_ref[...]
        gt = gt_ref[...]
        sel = pr > thr

        def _accumulate(sel_):
            # Fused predicate: sum(pr) contribution = sel; tp = gt where sel.
            pr_contrib = sel_.astype(jnp.float32)
            tp_contrib = jnp.where(sel_, gt, jnp.zeros_like(gt)).astype(jnp.float32)
            # Fold (block_rows,128) -> (8,128) with pure VPU adds; the expensive
            # cross-lane/sublane reduction is deferred to the (tiny) wrapper sum.
            tp_acc[...] += jnp.sum(tp_contrib.reshape(-1, SUBLANE, LANE), axis=0)
            pr_acc[...] += jnp.sum(pr_contrib.reshape(-1, SUBLANE, LANE), axis=0)

        @pl.when(g < last_g)
        def _bulk():
            _accumulate(sel)                  # no mask cost on bulk blocks

        @pl.when(g == last_g)
        def _last():
            if need_mask:
                # Block-relative ids (no int32 overflow); only the final block
                # pays the iota/compare/select cost.
                row_ids = lax.broadcasted_iota(jnp.int32, (block_rows, LANE), 0)
                lane_ids = lax.broadcasted_iota(jnp.int32, (block_rows, LANE), 1)
                valid = (row_ids * LANE + lane_ids) < valid_in_last
                _accumulate(jnp.logical_and(sel, valid))
            else:
                _accumulate(sel)

        # g > last_g: clamped duplicate block on the other split -> contributes nothing.

        @pl.when(i == pl.num_programs(1) - 1)
        def _finish():
            tp_out_ref[0] = tp_acc[...]
            pr_out_ref[0] = pr_acc[...]

    return kernel


def precision_pallas(y_pr, y_gt, eps=1e-07, threshold=0.5):
    """Pallas TPU implementation of the Precision metric. Returns f32 scalar."""
    assert y_pr.shape == y_gt.shape
    total = y_pr.size

    pr_flat = y_pr.reshape(-1)
    gt_flat = y_gt.reshape(-1)

    # Pad only to a multiple of LANE (128). For 128-aligned sizes (common for
    # NCHW) this is a pure layout no-op: no HBM copy of the inputs.
    pad = _round_up(total, LANE) - total
    if pad:
        pr_flat = jnp.pad(pr_flat, (0, pad))
        gt_flat = jnp.pad(gt_flat, (0, pad))

    rows = (total + pad) // LANE
    pr2d = pr_flat.reshape(rows, LANE)
    gt2d = gt_flat.reshape(rows, LANE)

    # Block rows: multiple of 8 (sublane), capped for VMEM.
    block_rows = min(_round_up(rows, SUBLANE), MAX_BLOCK_ROWS)
    n_blocks = pl.cdiv(rows, block_rows)
    blocks_per_split = pl.cdiv(n_blocks, NUM_SPLITS)

    # Zero padding is harmless when threshold > 0 (padded pr=0 fails the compare
    # and padded gt contributes 0 to tp); only the stale-VMEM tail of a partial
    # last block (and the pad region if threshold <= 0) needs masking.
    valid_limit = rows * LANE if threshold > 0 else total
    valid_in_last = valid_limit - (n_blocks - 1) * block_rows * LANE
    need_mask = valid_in_last != block_rows * LANE

    kernel = _make_precision_kernel(threshold, block_rows, blocks_per_split,
                                    n_blocks, valid_in_last, need_mask)

    def in_map(c, i):
        # Clamp so the (possibly empty) tail iterations of the second split
        # never issue an out-of-bounds DMA; their contribution is skipped in-kernel.
        return (jnp.minimum(c * blocks_per_split + i, n_blocks - 1), 0)

    tp_parts, pr_parts = pl.pallas_call(
        kernel,
        out_shape=(
            jax.ShapeDtypeStruct((NUM_SPLITS, SUBLANE, LANE), jnp.float32),
            jax.ShapeDtypeStruct((NUM_SPLITS, SUBLANE, LANE), jnp.float32),
        ),
        grid_spec=pltpu.PrefetchScalarGridSpec(
            num_scalar_prefetch=0,
            grid=(NUM_SPLITS, blocks_per_split),
            in_specs=[
                pl.BlockSpec((block_rows, LANE), in_map),
                pl.BlockSpec((block_rows, LANE), in_map),
            ],
            out_specs=[
                pl.BlockSpec((1, SUBLANE, LANE), lambda c, i: (c, 0, 0)),
                pl.BlockSpec((1, SUBLANE, LANE), lambda c, i: (c, 0, 0)),
            ],
            scratch_shapes=[
                pltpu.VMEM((SUBLANE, LANE), jnp.float32),  # tp partial sums
                pltpu.VMEM((SUBLANE, LANE), jnp.float32),  # sum(pr) partial sums
            ],
        ),
        compiler_params=pltpu.CompilerParams(
            dimension_semantics=("parallel", "arbitrary"),
            vmem_limit_bytes=VMEM_LIMIT_BYTES,
        ),
    )(pr2d, gt2d)

    tp = jnp.sum(tp_parts)
    s_pr = jnp.sum(pr_parts)       # == tp + fp
    eps = jnp.float32(eps)
    return (tp + eps) / (s_pr + eps)


def precision_ref(y_pr, y_gt, eps=1e-07, threshold=0.5):
    pr = (y_pr > threshold).astype(y_pr.dtype)
    tp = jnp.sum(y_gt * pr)
    fp = jnp.sum(pr) - tp
    return (tp + eps) / (tp + fp + eps)


if __name__ == "__main__":
    # NCHW inputs, matching the PyTorch convention: [B, C, H, W]
    key = jax.random.PRNGKey(0)
    k1, k2 = jax.random.split(key)
    B, C, H, W = 2, 4, 16, 16
    y_pr = jax.random.uniform(k1, (B, C, H, W), dtype=jnp.float32)           # "probabilities"
    y_gt = (jax.random.uniform(k2, (B, C, H, W)) > 0.5).astype(jnp.float32)  # binary masks

    score = precision_pallas(y_pr, y_gt, eps=1e-07, threshold=0.5)
    score = jax.block_until_ready(score)

    ref = precision_ref(y_pr, y_gt, eps=1e-07, threshold=0.5)
    assert jnp.allclose(score, ref, rtol=1e-5, atol=1e-6), (score, ref)

    print("KERNEL_OK")
</pallas_src>

<mosaic_0001>
module attributes {stable_mosaic.version = 11 : i64} {
  func.func @kernel(%arg0: i32, %arg1: i32, %arg2: memref<16x128xf32, #tpu.memory_space<vmem>>, %arg3: memref<16x128xf32, #tpu.memory_space<vmem>>, %arg4: memref<1x8x128xf32, #tpu.memory_space<vmem>>, %arg5: memref<1x8x128xf32, #tpu.memory_space<vmem>>, %arg6: memref<8x128xf32, #tpu.memory_space<vmem>>, %arg7: memref<8x128xf32, #tpu.memory_space<vmem>>) attributes {dimension_semantics = [#tpu.dimension_semantics<parallel>, #tpu.dimension_semantics<arbitrary>], iteration_bounds = array<i64: 2, 1>, scalar_prefetch = 0 : i64, scratch_operands = 2 : i64, tpu.core_type = #tpu.core_type<tc>, window_params = [{transform_indices = @transform_0, window_bounds = array<i64: 16, 128>}, {transform_indices = @transform_1, window_bounds = array<i64: 16, 128>}, {transform_indices = @transform_2, window_bounds = array<i64: 1, 8, 128>}, {transform_indices = @transform_3, window_bounds = array<i64: 1, 8, 128>}]} {
    %c1_i32 = arith.constant 1 : i32
    %0 = arith.muli %arg0, %c1_i32 : i32
    %1 = arith.addi %0, %arg1 : i32
    %c0_i32 = arith.constant 0 : i32
    %2 = arith.cmpi eq, %arg1, %c0_i32 : i32
    %3 = arith.extui %2 : i1 to i32
    %c0_i32_0 = arith.constant 0 : i32
    %4 = arith.cmpi ne, %3, %c0_i32_0 : i32
    scf.if %4 {
      %cst_10 = arith.constant 0.000000e+00 : f32
      %18 = vector.broadcast %cst_10 : f32 to vector<8x128xf32>
      %c0_11 = arith.constant 0 : index
      %c0_12 = arith.constant 0 : index
      %19 = vector.load %arg6[%c0_11, %c0_12] : memref<8x128xf32, #tpu.memory_space<vmem>>, vector<8x128xf32>
      tpu.vector_store %arg6[%c0_11, %c0_12], %18 {strides = array<i32>} : memref<8x128xf32, #tpu.memory_space<vmem>>, vector<8x128xf32>,
      %cst_13 = arith.constant 0.000000e+00 : f32
      %20 = vector.broadcast %cst_13 : f32 to vector<8x128xf32>
      %c0_14 = arith.constant 0 : index
      %c0_15 = arith.constant 0 : index
      %21 = vector.load %arg7[%c0_14, %c0_15] : memref<8x128xf32, #tpu.memory_space<vmem>>, vector<8x128xf32>
      tpu.vector_store %arg7[%c0_14, %c0_15], %20 {strides = array<i32>} : memref<8x128xf32, #tpu.memory_space<vmem>>, vector<8x128xf32>,
    } else {
    }
    %c0 = arith.constant 0 : index
    %c0_1 = arith.constant 0 : index
    %5 = vector.load %arg2[%c0, %c0_1] : memref<16x128xf32, #tpu.memory_space<vmem>>, vector<16x128xf32>
    %c0_2 = arith.constant 0 : index
    %c0_3 = arith.constant 0 : index
    %6 = vector.load %arg3[%c0_2, %c0_3] : memref<16x128xf32, #tpu.memory_space<vmem>>, vector<16x128xf32>
    %cst = arith.constant 5.000000e-01 : f32
    %7 = vector.broadcast %cst : f32 to vector<16x128xf32>
    %8 = arith.cmpf ogt, %5, %7 : vector<16x128xf32>
    %c0_i32_4 = arith.constant 0 : i32
    %9 = arith.cmpi slt, %1, %c0_i32_4 : i32
    %10 = arith.extui %9 : i1 to i32
    %c0_i32_5 = arith.constant 0 : i32
    %11 = arith.cmpi ne, %10, %c0_i32_5 : i32
    scf.if %11 {
      %18 = arith.extui %8 : vector<16x128xi1> to vector<16x128xi32>
      %19 = arith.sitofp %18 : vector<16x128xi32> to vector<16x128xf32>
      %cst_10 = arith.constant 0.000000e+00 : f32
      %20 = vector.broadcast %cst_10 : f32 to vector<16x128xf32>
      %21 = arith.select %8, %6, %20 : vector<16x128xi1>, vector<16x128xf32>
      %c0_11 = arith.constant 0 : index
      %c0_12 = arith.constant 0 : index
      %22 = vector.load %arg6[%c0_11, %c0_12] : memref<8x128xf32, #tpu.memory_space<vmem>>, vector<8x128xf32>
      %23 = vector.shape_cast %21 : vector<16x128xf32> to vector<2x8x128xf32>
      %cst_13 = arith.constant dense<0.000000e+00> : vector<8x128xf32>
      %24 = vector.multi_reduction <add>, %23, %cst_13 [0] : vector<2x8x128xf32> to vector<8x128xf32>
      %25 = arith.addf %22, %24 : vector<8x128xf32>
      %c0_14 = arith.constant 0 : index
      %c0_15 = arith.constant 0 : index
      %26 = vector.load %arg6[%c0_14, %c0_15] : memref<8x128xf32, #tpu.memory_space<vmem>>, vector<8x128xf32>
      tpu.vector_store %arg6[%c0_14, %c0_15], %25 {strides = array<i32>} : memref<8x128xf32, #tpu.memory_space<vmem>>, vector<8x128xf32>,
      %c0_16 = arith.constant 0 : index
      %c0_17 = arith.constant 0 : index
      %27 = vector.load %arg7[%c0_16, %c0_17] : memref<8x128xf32, #tpu.memory_space<vmem>>, vector<8x128xf32>
      %28 = vector.shape_cast %19 : vector<16x128xf32> to vector<2x8x128xf32>
      %cst_18 = arith.constant dense<0.000000e+00> : vector<8x128xf32>
      %29 = vector.multi_reduction <add>, %28, %cst_18 [0] : vector<2x8x128xf32> to vector<8x128xf32>
      %30 = arith.addf %27, %29 : vector<8x128xf32>
      %c0_19 = arith.constant 0 : index
      %c0_20 = arith.constant 0 : index
      %31 = vector.load %arg7[%c0_19, %c0_20] : memref<8x128xf32, #tpu.memory_space<vmem>>, vector<8x128xf32>
      tpu.vector_store %arg7[%c0_19, %c0_20], %30 {strides = array<i32>} : memref<8x128xf32, #tpu.memory_space<vmem>>, vector<8x128xf32>,
    } else {
    }
    %c0_i32_6 = arith.constant 0 : i32
    %12 = arith.cmpi eq, %1, %c0_i32_6 : i32
    %13 = arith.extui %12 : i1 to i32
    %c0_i32_7 = arith.constant 0 : i32
    %14 = arith.cmpi ne, %13, %c0_i32_7 : i32
    scf.if %14 {
      %18 = arith.extui %8 : vector<16x128xi1> to vector<16x128xi32>
      %19 = arith.sitofp %18 : vector<16x128xi32> to vector<16x128xf32>
      %cst_10 = arith.constant 0.000000e+00 : f32
      %20 = vector.broadcast %cst_10 : f32 to vector<16x128xf32>
      %21 = arith.select %8, %6, %20 : vector<16x128xi1>, vector<16x128xf32>
      %c0_11 = arith.constant 0 : index
      %c0_12 = arith.constant 0 : index
      %22 = vector.load %arg6[%c0_11, %c0_12] : memref<8x128xf32, #tpu.memory_space<vmem>>, vector<8x128xf32>
      %23 = vector.shape_cast %21 : vector<16x128xf32> to vector<2x8x128xf32>
      %cst_13 = arith.constant dense<0.000000e+00> : vector<8x128xf32>
      %24 = vector.multi_reduction <add>, %23, %cst_13 [0] : vector<2x8x128xf32> to vector<8x128xf32>
      %25 = arith.addf %22, %24 : vector<8x128xf32>
      %c0_14 = arith.constant 0 : index
      %c0_15 = arith.constant 0 : index
      %26 = vector.load %arg6[%c0_14, %c0_15] : memref<8x128xf32, #tpu.memory_space<vmem>>, vector<8x128xf32>
      tpu.vector_store %arg6[%c0_14, %c0_15], %25 {strides = array<i32>} : memref<8x128xf32, #tpu.memory_space<vmem>>, vector<8x128xf32>,
      %c0_16 = arith.constant 0 : index
      %c0_17 = arith.constant 0 : index
      %27 = vector.load %arg7[%c0_16, %c0_17] : memref<8x128xf32, #tpu.memory_space<vmem>>, vector<8x128xf32>
      %28 = vector.shape_cast %19 : vector<16x128xf32> to vector<2x8x128xf32>
      %cst_18 = arith.constant dense<0.000000e+00> : vector<8x128xf32>
      %29 = vector.multi_reduction <add>, %28, %cst_18 [0] : vector<2x8x128xf32> to vector<8x128xf32>
      %30 = arith.addf %27, %29 : vector<8x128xf32>
      %c0_19 = arith.constant 0 : index
      %c0_20 = arith.constant 0 : index
      %31 = vector.load %arg7[%c0_19, %c0_20] : memref<8x128xf32, #tpu.memory_space<vmem>>, vector<8x128xf32>
      tpu.vector_store %arg7[%c0_19, %c0_20], %30 {strides = array<i32>} : memref<8x128xf32, #tpu.memory_space<vmem>>, vector<8x128xf32>,
    } else {
    }
    %c0_i32_8 = arith.constant 0 : i32
    %15 = arith.cmpi eq, %arg1, %c0_i32_8 : i32
    %16 = arith.extui %15 : i1 to i32
    %c0_i32_9 = arith.constant 0 : i32
    %17 = arith.cmpi ne, %16, %c0_i32_9 : i32
    scf.if %17 {
      %c0_10 = arith.constant 0 : index
      %c0_11 = arith.constant 0 : index
      %18 = vector.load %arg6[%c0_10, %c0_11] : memref<8x128xf32, #tpu.memory_space<vmem>>, vector<8x128xf32>
      %c0_12 = arith.constant 0 : index
      %c0_13 = arith.constant 0 : index
      %c0_14 = arith.constant 0 : index
      %19 = vector.load %arg4[%c0_12, %c0_13, %c0_14] : memref<1x8x128xf32, #tpu.memory_space<vmem>>, vector<1x8x128xf32>
      %20 = vector.shape_cast %19 : vector<1x8x128xf32> to vector<8x128xf32>
      %21 = vector.shape_cast %18 : vector<8x128xf32> to vector<1x8x128xf32>
      tpu.vector_store %arg4[%c0_12, %c0_13, %c0_14], %21 {strides = array<i32>} : memref<1x8x128xf32, #tpu.memory_space<vmem>>, vector<1x8x128xf32>,
      %c0_15 = arith.constant 0 : index
      %c0_16 = arith.constant 0 : index
      %22 = vector.load %arg7[%c0_15, %c0_16] : memref<8x128xf32, #tpu.memory_space<vmem>>, vector<8x128xf32>
      %c0_17 = arith.constant 0 : index
      %c0_18 = arith.constant 0 : index
      %c0_19 = arith.constant 0 : index
      %23 = vector.load %arg5[%c0_17, %c0_18, %c0_19] : memref<1x8x128xf32, #tpu.memory_space<vmem>>, vector<1x8x128xf32>
      %24 = vector.shape_cast %23 : vector<1x8x128xf32> to vector<8x128xf32>
      %25 = vector.shape_cast %22 : vector<8x128xf32> to vector<1x8x128xf32>
      tpu.vector_store %arg5[%c0_17, %c0_18, %c0_19], %25 {strides = array<i32>} : memref<1x8x128xf32, #tpu.memory_space<vmem>>, vector<1x8x128xf32>,
    } else {
    }
    return
  }
  func.func @transform_0(%arg0: i32, %arg1: i32) -> (i32, i32) {
    %c1_i32 = arith.constant 1 : i32
    %0 = arith.muli %arg0, %c1_i32 : i32
    %1 = arith.addi %0, %arg1 : i32
    %c0_i32 = arith.constant 0 : i32
    %2 = arith.minsi %1, %c0_i32 : i32
    %c0_i32_0 = arith.constant 0 : i32
    %c0_i32_1 = arith.constant 0 : i32
    return %2, %c0_i32_0 : i32, i32
  }
  func.func @transform_1(%arg0: i32, %arg1: i32) -> (i32, i32) {
    %c1_i32 = arith.constant 1 : i32
    %0 = arith.muli %arg0, %c1_i32 : i32
    %1 = arith.addi %0, %arg1 : i32
    %c0_i32 = arith.constant 0 : i32
    %2 = arith.minsi %1, %c0_i32 : i32
    %c0_i32_0 = arith.constant 0 : i32
    %c0_i32_1 = arith.constant 0 : i32
    return %2, %c0_i32_0 : i32, i32
  }
  func.func @transform_2(%arg0: i32, %arg1: i32) -> (i32, i32, i32) {
    %c0_i32 = arith.constant 0 : i32
    %c0_i32_0 = arith.constant 0 : i32
    %c0_i32_1 = arith.constant 0 : i32
    return %arg0, %c0_i32, %c0_i32_0 : i32, i32, i32
  }
  func.func @transform_3(%arg0: i32, %arg1: i32) -> (i32, i32, i32) {
    %c0_i32 = arith.constant 0 : i32
    %c0_i32_0 = arith.constant 0 : i32
    %c0_i32_1 = arith.constant 0 : i32
    return %arg0, %c0_i32, %c0_i32_0 : i32, i32, i32
  }
}

</mosaic_0001>

<llo_original>
// kernel: tpu_custom_call.1
$region0: #{tpu_custom_call.1}
  #allocation0 [shape = 'u32[]', space=smem, size = 0x4, offset = 0x4, fixed_abs, tag = 'smem constant byte address 0x4 - core index']
  #allocation1 [shape = 'u32[144,128]{1,0:T(1,128)}', space=vmem, size = 0x12000, scoped, tag = 'internal scratch']
  #allocation2 [shape = 'f32[8,128]{1,0:T(8,128)}', space=vmem, size = 0x1000, scoped, tag = 'scratch operand']
  #allocation3 [shape = 'f32[8,128]{1,0:T(8,128)}', space=vmem, size = 0x1000, scoped, tag = 'scratch operand']
  %s0 = inlined_call_operand.hbm [shape: f32[16,128], index: 0, kind: input, shape index: {}]
  %s1 = inlined_call_operand.hbm [shape: f32[16,128], index: 1, kind: input, shape index: {}]
  %s2 = inlined_call_operand.hbm [shape: f32[2,8,128], index: 2, kind: output, shape index: {0}]
  %s3 = inlined_call_operand.hbm [shape: f32[2,8,128], index: 3, kind: output, shape index: {1}]
  %4 = xla_tuple %s2, %s3
  %s5 = sld [smem:[#allocation0]]
  $region73: #{tpu_custom_call.1} parent=0
    _
  %s7 = ssub.s32 1, %s5
  %s8 = scalar_select 0, %s7, %s5
  $region1: #{tpu_custom_call.1} parent=0
    #allocation4 [shape = 'u8[16384]{0}', space=vmem, size = 0x4000, scoped, tag = 'input window, operand 0']
    #allocation5 [shape = 's32[2]{0}', space=sflag, size = 0x8, scoped, tag = 'scoped memory for tpu_custom_call.1']
    #allocation6 [shape = 's32[2]{0}', space=sflag, size = 0x8, scoped, tag = 'scoped memory for tpu_custom_call.1']
    #allocation7 [shape = 'u8[16384]{0}', space=vmem, size = 0x4000, scoped, tag = 'input window, operand 1']
    #allocation8 [shape = 's32[2]{0}', space=sflag, size = 0x8, scoped, tag = 'scoped memory for tpu_custom_call.1']
    #allocation9 [shape = 'u8[8192]{0}', space=vmem, size = 0x2000, scoped, tag = 'output window, operand 0']
    #allocation10 [shape = 'u8[8192]{0}', space=vmem, size = 0x2000, scoped, tag = 'output window, operand 1']
    #allocation11 [shape = 's32[2]{0}', space=sflag, size = 0x8, scoped, tag = 'scoped memory for tpu_custom_call.1']
    %9 = vsyncpa [#allocation5], 0
    %s10 = scalar_lea.sflag [#allocation5], 1
    %11 = vsyncpa %s10, 0
    %12 = vsyncpa [#allocation8], 0
    %s13 = scalar_lea.sflag [#allocation8], 1
    %14 = vsyncpa %s13, 0
    %15 = vsyncpa [#allocation6], 0
    %s16 = scalar_lea.sflag [#allocation6], 1
    %17 = vsyncpa %s16, 0
    %18 = vsyncpa [#allocation11], 0
    %s19 = scalar_lea.sflag [#allocation11], 1
    %20 = vsyncpa %s19, 0
    loop: start=0, step=1, limit=4
    $region2: #{tpu_custom_call.1} parent=1 // loop_pre_header
      _
    $region3: #{tpu_custom_call.1} parent=1 // loop_header
      %s22 = sphi 0, %s26
      %p23 = scmp.ge.s32.totalorder %s22, 4
      %s29 = sphi 0, %s41
      %s30 = sphi 0, %s37
      %s31 = sphi 0, %s29
      %s32 = sphi 0, %s30
      %s33 = sphi 0, %s31
      %s34 = sphi 0, %s32
      %s50 = sphi 0, %s52
      %s53 = sphi 0, %s50
      %s54 = sphi 0, %s53
      %s70 = sphi 0, %s54
      %s82 = sphi 0, %s84
      %s85 = sphi 0, %s82
      %s86 = sphi 0, %s85
      %s102 = sphi 0, %s86
      %s108 = sphi 0, %s110
      %s111 = sphi 0, %s108
      %s112 = sphi 0, %s111
      %s128 = sphi 0, %s112
      %s134 = sphi 0, %s136
      %s137 = sphi 0, %s134
      %s138 = sphi 0, %s137
      %s154 = sphi 0, %s138
    $region4: #{tpu_custom_call.1} parent=1 // loop_header_branch
      %25 = sbr.rel (%p23) target = $region8
    $region5: #{tpu_custom_call.1} parent=1 // loop_body
      %s27 = ssub.s32 %s22, 1
      %s28 = ssub.s32 %s22, 2
      %s35 = sadd.s32 1, %s30
      %p36 = scmp.ge.s32.totalorder %s35, 1
      %s37 = scalar_select %p36, 0, %s35
      %s38 = sadd.s32 1, %s29
      %s39 = scalar_select %p36, %s38, %s29
      %p40 = scmp.ge.s32.totalorder %s39, 2
      %s41 = scalar_select %p40, 0, %s39
      %s42 = sadd.s32 %s29, %s30
      %p43 = scmp.lt.s32.totalorder %s42, 0
      %s44 = scalar_select %p43, %s42, 0
      %s45 = sadd.s32 %s41, %s37
      %p46 = scmp.lt.s32.totalorder %s45, 0
      %s47 = scalar_select %p46, %s45, 0
      %s48 = ssub.s32 %s44, %s47
      %p49 = scmp.eq.s32.totalorder %s48, 0
      %s51 = sadd.s32 %s50, 1
      %s52 = scalar_select %p49, %s50, %s51
      %p55 = pneg %p49
      %p56 = scmp.eq.s32.totalorder %s22, 1
      %p57 = por %p55, %p56
      %p58 = scmp.ne.s32.totalorder %s50, %s53
      %p59 = scmp.eq.s32.totalorder %s22, 0
      %p60 = por %p58, %p59
      %p61 = scmp.ne.s32.totalorder %s50, %s53
      %p62 = scmp.eq.s32.totalorder %s27, 1
      %p63 = por %p61, %p62
      %p64 = scmp.ne.s32.totalorder %s53, %s54
      %p65 = scmp.eq.s32.totalorder %s27, 0
      %p66 = por %p64, %p65
      %p67 = scmp.ne.s32.totalorder %s53, %s54
      %p68 = scmp.eq.s32.totalorder %s28, 1
      %p69 = por %p67, %p68
      %p71 = scmp.ne.s32.totalorder %s54, %s70
      %p72 = scmp.eq.s32.totalorder %s28, 0
      %p73 = por %p71, %p72
      %s74 = sadd.s32 %s29, %s30
      %p75 = scmp.lt.s32.totalorder %s74, 0
      %s76 = scalar_select %p75, %s74, 0
      %s77 = sadd.s32 %s41, %s37
      %p78 = scmp.lt.s32.totalorder %s77, 0
      %s79 = scalar_select %p78, %s77, 0
      %s80 = ssub.s32 %s76, %s79
      %p81 = scmp.eq.s32.totalorder %s80, 0
      %s83 = sadd.s32 %s82, 1
      %s84 = scalar_select %p81, %s82, %s83
      %p87 = pneg %p81
      %p88 = scmp.eq.s32.totalorder %s22, 1
      %p89 = por %p87, %p88
      %p90 = scmp.ne.s32.totalorder %s82, %s85
      %p91 = scmp.eq.s32.totalorder %s22, 0
      %p92 = por %p90, %p91
      %p93 = scmp.ne.s32.totalorder %s82, %s85
      %p94 = scmp.eq.s32.totalorder %s27, 1
      %p95 = por %p93, %p94
      %p96 = scmp.ne.s32.totalorder %s85, %s86
      %p97 = scmp.eq.s32.totalorder %s27, 0
      %p98 = por %p96, %p97
      %p99 = scmp.ne.s32.totalorder %s85, %s86
      %p100 = scmp.eq.s32.totalorder %s28, 1
      %p101 = por %p99, %p100
      %p103 = scmp.ne.s32.totalorder %s86, %s102
      %p104 = scmp.eq.s32.totalorder %s28, 0
      %p105 = por %p103, %p104
      %s106 = ssub.s32 %s29, %s41
      %p107 = scmp.eq.s32.totalorder %s106, 0
      %s109 = sadd.s32 %s108, 1
      %s110 = scalar_select %p107, %s108, %s109
      %p113 = pneg %p107
      %p114 = scmp.eq.s32.totalorder %s22, 1
      %p115 = por %p113, %p114
      %p116 = scmp.ne.s32.totalorder %s108, %s111
      %p117 = scmp.eq.s32.totalorder %s22, 0
      %p118 = por %p116, %p117
      %p119 = scmp.ne.s32.totalorder %s108, %s111
      %p120 = scmp.eq.s32.totalorder %s27, 1
      %p121 = por %p119, %p120
      %p122 = scmp.ne.s32.totalorder %s111, %s112
      %p123 = scmp.eq.s32.totalorder %s27, 0
      %p124 = por %p122, %p123
      %p125 = scmp.ne.s32.totalorder %s111, %s112
      %p126 = scmp.eq.s32.totalorder %s28, 1
      %p127 = por %p125, %p126
      %p129 = scmp.ne.s32.totalorder %s112, %s128
      %p130 = scmp.eq.s32.totalorder %s28, 0
      %p131 = por %p129, %p130
      %s132 = ssub.s32 %s29, %s41
      %p133 = scmp.eq.s32.totalorder %s132, 0
      %s135 = sadd.s32 %s134, 1
      %s136 = scalar_select %p133, %s134, %s135
      %p139 = pneg %p133
      %p140 = scmp.eq.s32.totalorder %s22, 1
      %p141 = por %p139, %p140
      %p142 = scmp.ne.s32.totalorder %s134, %s137
      %p143 = scmp.eq.s32.totalorder %s22, 0
      %p144 = por %p142, %p143
      %p145 = scmp.ne.s32.totalorder %s134, %s137
      %p146 = scmp.eq.s32.totalorder %s27, 1
      %p147 = por %p145, %p146
      %p148 = scmp.ne.s32.totalorder %s137, %s138
      %p149 = scmp.eq.s32.totalorder %s27, 0
      %p150 = por %p148, %p149
      %p151 = scmp.ne.s32.totalorder %s137, %s138
      %p152 = scmp.eq.s32.totalorder %s28, 1
      %p153 = por %p151, %p152
      %p155 = scmp.ne.s32.totalorder %s138, %s154
      %p156 = scmp.eq.s32.totalorder %s28, 0
      %p157 = por %p155, %p156
      %p158 = scmp.le.s32.totalorder 1, %s22
      %p159 = scmp.lt.s32.totalorder %s22, 3
      %p160 = pnand %p158, %p159
      %p161 = pneg %p160
      // Predicated region
      $region9: #{tpu_custom_call.1} parent=5 // pred_check
        _
      $region10: #{tpu_custom_call.1} parent=5 // pred_check_branch
        %163 = sbr.rel (%p160) target = $region12
      $region11: #{tpu_custom_call.1} parent=5 // pred_region
        %s164 = ssub.s32 %s22, 1
      $region12: #{tpu_custom_call.1} parent=5 // pred_fallthru
        _
      %p165 = scmp.lt.s32.totalorder %s22, 2
      // Predicated region
      $region13: #{tpu_custom_call.1} parent=5 // pred_check
        %p166 = pneg %p165
      $region14: #{tpu_custom_call.1} parent=5 // pred_check_branch
        %168 = sbr.rel (%p166) target = $region16
      $region15: #{tpu_custom_call.1} parent=5 // pred_region
        // Predicated region
        $region17: #{tpu_custom_call.1} parent=15 // pred_check
          %p169 = pneg %p60
        $region18: #{tpu_custom_call.1} parent=15 // pred_check_branch
          %171 = sbr.rel (%p169) target = $region20
        $region19: #{tpu_custom_call.1} parent=15 // pred_region
          %s172 = sand.u32 %s50, 1
          %s173 = scalar_lea.sflag [#allocation5], %s172
          %s174 = sand.u32 %s50, 1
          %s175 = smul.addr %s174, 16
          %s176 = scalar_lea.vmem [#allocation4], %s175
          %s177 = sadd.s32 %s29, %s30
          %p178 = scmp.lt.s32.totalorder %s177, 0
          %s179 = scalar_select %p178, %s177, 0
          %s180 = smul.u32 2, %s179
          %s182 = ssub.s32 256, 256
          %183 = vsyncadd %s173, %s182
          %s184 = smul.addr %s180, 128
          %s185 = scalar_lea.hbm %s0, %s184
          %s186 = sshll.u32 %s176, 4
          %s187 = int_to_ptr.vmem [resolvable:$true] %s186
          %192 = dma.hbm_to_vmem [thread:$0]  %s185, 256, %s187, %s173, 128, 128, 8
        $region20: #{tpu_custom_call.1} parent=15 // pred_fallthru
          _
        // Predicated region
        $region21: #{tpu_custom_call.1} parent=15 // pred_check
          %p193 = pneg %p92
        $region22: #{tpu_custom_call.1} parent=15 // pred_check_branch
          %195 = sbr.rel (%p193) target = $region24
        $region23: #{tpu_custom_call.1} parent=15 // pred_region
          %s196 = sand.u32 %s82, 1
          %s197 = scalar_lea.sflag [#allocation8], %s196
          %s198 = sand.u32 %s82, 1
          %s199 = smul.addr %s198, 16
          %s200 = scalar_lea.vmem [#allocation7], %s199
          %s201 = sadd.s32 %s29, %s30
          %p202 = scmp.lt.s32.totalorder %s201, 0
          %s203 = scalar_select %p202, %s201, 0
          %s204 = smul.u32 2, %s203
          %s206 = ssub.s32 256, 256
          %207 = vsyncadd %s197, %s206
          %s208 = smul.addr %s204, 128
          %s209 = scalar_lea.hbm %s1, %s208
          %s210 = sshll.u32 %s200, 4
          %s211 = int_to_ptr.vmem [resolvable:$true] %s210
          %216 = dma.hbm_to_vmem [thread:$0]  %s209, 256, %s211, %s197, 128, 128, 8
        $region24: #{tpu_custom_call.1} parent=15 // pred_fallthru
          _
      $region16: #{tpu_custom_call.1} parent=5 // pred_fallthru
        _
      %p217 = scmp.le.s32.totalorder 1, %s22
      %p218 = scmp.lt.s32.totalorder %s22, 3
      %p219 = pnand %p217, %p218
      %p220 = pneg %p219
      // Predicated region
      $region25: #{tpu_custom_call.1} parent=5 // pred_check
        _
      $region26: #{tpu_custom_call.1} parent=5 // pred_check_branch
        %222 = sbr.rel (%p219) target = $region28
      $region27: #{tpu_custom_call.1} parent=5 // pred_region
        %s223 = ssub.s32 %s22, 1
        %s224 = sand.u32 %s53, 1
        %s225 = scalar_lea.sflag [#allocation5], %s224
        %s226 = sand.u32 %s53, 1
        %s227 = smul.addr %s226, 16
        %s228 = scalar_lea.vmem [#allocation4], %s227
        // Predicated region
        $region29: #{tpu_custom_call.1} parent=27 // pred_check
          %p229 = pneg %p66
        $region30: #{tpu_custom_call.1} parent=27 // pred_check_branch
          %231 = sbr.rel (%p229) target = $region32
        $region31: #{tpu_custom_call.1} parent=27 // pred_region
          %232 = dma.done %s225, 256
        $region32: #{tpu_custom_call.1} parent=27 // pred_fallthru
          _
        %s233 = sand.u32 %s85, 1
        %s234 = scalar_lea.sflag [#allocation8], %s233
        %s235 = sand.u32 %s85, 1
        %s236 = smul.addr %s235, 16
        %s237 = scalar_lea.vmem [#allocation7], %s236
        // Predicated region
        $region33: #{tpu_custom_call.1} parent=27 // pred_check
          %p238 = pneg %p98
        $region34: #{tpu_custom_call.1} parent=27 // pred_check_branch
          %240 = sbr.rel (%p238) target = $region36
        $region35: #{tpu_custom_call.1} parent=27 // pred_region
          %241 = dma.done %s234, 256
        $region36: #{tpu_custom_call.1} parent=27 // pred_fallthru
          _
        %s242 = sand.u32 %s53, 1
        %s243 = scalar_lea.sflag [#allocation5], %s242
        %s244 = sand.u32 %s53, 1
        %s245 = smul.addr %s244, 16
        %s246 = scalar_lea.vmem [#allocation4], %s245
        %p247 = pneg %p66
        %p248 = pneg %p63
        %s249 = sand.u32 %s85, 1
        %s250 = scalar_lea.sflag [#allocation8], %s249
        %s251 = sand.u32 %s85, 1
        %s252 = smul.addr %s251, 16
        %s253 = scalar_lea.vmem [#allocation7], %s252
        %p254 = pneg %p98
        %p255 = pneg %p95
        %p256 = pneg %p124
        %p257 = pneg %p121
        %s258 = sand.u32 %s111, 1
        %s259 = scalar_lea.sflag [#allocation6], %s258
        %s260 = sand.u32 %s111, 1
        %s261 = smul.addr %s260, 8
        %s262 = scalar_lea.vmem [#allocation9], %s261
        %p263 = pneg %p150
        %p264 = pneg %p147
        %s265 = sand.u32 %s137, 1
        %s266 = scalar_lea.sflag [#allocation11], %s265
        %s267 = sand.u32 %s137, 1
        %s268 = smul.addr %s267, 8
        %s269 = scalar_lea.vmem [#allocation10], %s268
        %s270 = sadd.s32 %s31, %s32
        %p271 = scmp.lt.s32.totalorder %s270, 0
        %s272 = scalar_select %p271, %s270, 0
        %s273 = smul.u32 2, %s272
        %s274 = sadd.s32 %s31, %s32
        %p275 = scmp.lt.s32.totalorder %s274, 0
        %s276 = scalar_select %p275, %s274, 0
        %s277 = smul.u32 2, %s276
        %s278 = sadd.s32 %s31, %s32
        %p279 = scmp.eq.s32.totalorder %s32, 0
        // Predicated region
        $region37: #{tpu_custom_call.1} parent=27 // pred_check
          %p280 = pneg %p279
        $region38: #{tpu_custom_call.1} parent=27 // pred_check_branch
          %282 = sbr.rel (%p280) target = $region40
        $region39: #{tpu_custom_call.1} parent=27 // pred_region
          %283 = vst [vmem:[#allocation2] sm:$0xff] 0.0
          %284 = vst [vmem:[#allocation3] sm:$0xff] 0.0
        $region40: #{tpu_custom_call.1} parent=27 // pred_fallthru
          _
        %v285 = vld [vmem:[%s228] sm:$0xff]
        %v286 = vld [vmem:[%s228 + $0x8] sm:$0xff]
        %v287 = vld [vmem:[%s237] sm:$0xff]
        %v288 = vld [vmem:[%s237 + $0x8] sm:$0xff]
        %vm289 = vcmp.gt.f32.partialorder %v285, 0.5
        %vm290 = vcmp.gt.f32.partialorder %v286, 0.5
        %p291 = scmp.lt.s32.totalorder %s278, 0
        // Predicated region
        $region41: #{tpu_custom_call.1} parent=27 // pred_check
          %p292 = pneg %p291
        $region42: #{tpu_custom_call.1} parent=27 // pred_check_branch
          %294 = sbr.rel (%p292) target = $region44
        $region43: #{tpu_custom_call.1} parent=27 // pred_region
          %v295 = vsel %vm289, 1, 0
          %v296 = vsel %vm290, 1, 0
          %v297 = vcvt.s32.f32 %v295
          %v298 = vcvt.s32.f32 %v296
          %v299 = vsel %vm289, %v287, 0.0
          %v300 = vsel %vm290, %v288, 0.0
          %v301 = vld [vmem:[#allocation2] sm:$0xff]
          %v302 = vadd.f32 %v299, %v300
          %v303 = vadd.f32 %v301, %v302
          %304 = vst [vmem:[#allocation2] sm:$0xff] %v303
          %v305 = vld [vmem:[#allocation3] sm:$0xff]
          %v306 = vadd.f32 %v297, %v298
          %v307 = vadd.f32 %v305, %v306
          %308 = vst [vmem:[#allocation3] sm:$0xff] %v307
        $region44: #{tpu_custom_call.1} parent=27 // pred_fallthru
          _
        %p309 = scmp.eq.s32.totalorder %s278, 0
        // Predicated region
        $region45: #{tpu_custom_call.1} parent=27 // pred_check
          %p310 = pneg %p309
        $region46: #{tpu_custom_call.1} parent=27 // pred_check_branch
          %312 = sbr.rel (%p310) target = $region48
        $region47: #{tpu_custom_call.1} parent=27 // pred_region
          %v313 = vsel %vm289, 1, 0
          %v314 = vsel %vm290, 1, 0
          %v315 = vcvt.s32.f32 %v313
          %v316 = vcvt.s32.f32 %v314
          %v317 = vsel %vm289, %v287, 0.0
          %v318 = vsel %vm290, %v288, 0.0
          %v319 = vld [vmem:[#allocation2] sm:$0xff]
          %v320 = vadd.f32 %v317, %v318
          %v321 = vadd.f32 %v319, %v320
          %322 = vst [vmem:[#allocation2] sm:$0xff] %v321
          %v323 = vld [vmem:[#allocation3] sm:$0xff]
          %v324 = vadd.f32 %v315, %v316
          %v325 = vadd.f32 %v323, %v324
          %326 = vst [vmem:[#allocation3] sm:$0xff] %v325
        $region48: #{tpu_custom_call.1} parent=27 // pred_fallthru
          _
        // Predicated region
        $region49: #{tpu_custom_call.1} parent=27 // pred_check
          %p327 = pneg %p279
        $region50: #{tpu_custom_call.1} parent=27 // pred_check_branch
          %329 = sbr.rel (%p327) target = $region52
        $region51: #{tpu_custom_call.1} parent=27 // pred_region
          %v330 = vld [vmem:[#allocation2] sm:$0xff]
          %331 = vst [vmem:[%s262] sm:$0xff] %v330
          %v332 = vld [vmem:[#allocation3] sm:$0xff]
          %333 = vst [vmem:[%s269] sm:$0xff] %v332
        $region52: #{tpu_custom_call.1} parent=27 // pred_fallthru
          _
        %s334 = sand.u32 %s111, 1
        %s335 = scalar_lea.sflag [#allocation6], %s334
        %s336 = sand.u32 %s111, 1
        %s337 = smul.addr %s336, 8
        %s338 = scalar_lea.vmem [#allocation9], %s337
        %s339 = sand.u32 %s137, 1
        %s340 = scalar_lea.sflag [#allocation11], %s339
        %s341 = sand.u32 %s137, 1
        %s342 = smul.addr %s341, 8
        %s343 = scalar_lea.vmem [#allocation10], %s342
        // Predicated region
        $region53: #{tpu_custom_call.1} parent=27 // pred_check
          %p344 = pneg %p121
        $region54: #{tpu_custom_call.1} parent=27 // pred_check_branch
          %346 = sbr.rel (%p344) target = $region56
        $region55: #{tpu_custom_call.1} parent=27 // pred_region
          %s348 = ssub.s32 128, 128
          %349 = vsyncadd %s335, %s348
          %s350 = smul.addr %s31, 128
          %s351 = scalar_lea.hbm %s2, %s350
          %s353 = sshll.u32 %s338, 4
          %s354 = int_to_ptr.vmem [resolvable:$true] %s353
          %356 = dma.vmem_to_hbm [thread:$0]  %s354, 128, %s351, %s335
        $region56: #{tpu_custom_call.1} parent=27 // pred_fallthru
          _
        // Predicated region
        $region57: #{tpu_custom_call.1} parent=27 // pred_check
          %p357 = pneg %p147
        $region58: #{tpu_custom_call.1} parent=27 // pred_check_branch
          %359 = sbr.rel (%p357) target = $region60
        $region59: #{tpu_custom_call.1} parent=27 // pred_region
          %s361 = ssub.s32 128, 128
          %362 = vsyncadd %s340, %s361
          %s363 = smul.addr %s31, 128
          %s364 = scalar_lea.hbm %s3, %s363
          %s366 = sshll.u32 %s343, 4
          %s367 = int_to_ptr.vmem [resolvable:$true] %s366
          %369 = dma.vmem_to_hbm [thread:$0]  %s367, 128, %s364, %s340
        $region60: #{tpu_custom_call.1} parent=27 // pred_fallthru
          _
      $region28: #{tpu_custom_call.1} parent=5 // pred_fallthru
        _
      %p370 = scmp.le.s32.totalorder 2, %s22
      // Predicated region
      $region61: #{tpu_custom_call.1} parent=5 // pred_check
        %p371 = pneg %p370
      $region62: #{tpu_custom_call.1} parent=5 // pred_check_branch
        %373 = sbr.rel (%p371) target = $region64
      $region63: #{tpu_custom_call.1} parent=5 // pred_region
        %s374 = ssub.s32 %s22, 2
        // Predicated region
        $region65: #{tpu_custom_call.1} parent=63 // pred_check
          %p375 = pneg %p127
        $region66: #{tpu_custom_call.1} parent=63 // pred_check_branch
          %377 = sbr.rel (%p375) target = $region68
        $region67: #{tpu_custom_call.1} parent=63 // pred_region
          %s378 = sand.u32 %s112, 1
          %s379 = scalar_lea.sflag [#allocation6], %s378
          %s380 = sand.u32 %s112, 1
          %s381 = smul.addr %s380, 8
          %s382 = scalar_lea.vmem [#allocation9], %s381
          %383 = dma.done %s379, 128
        $region68: #{tpu_custom_call.1} parent=63 // pred_fallthru
          _
        // Predicated region
        $region69: #{tpu_custom_call.1} parent=63 // pred_check
          %p384 = pneg %p153
        $region70: #{tpu_custom_call.1} parent=63 // pred_check_branch
          %386 = sbr.rel (%p384) target = $region72
        $region71: #{tpu_custom_call.1} parent=63 // pred_region
          %s387 = sand.u32 %s138, 1
          %s388 = scalar_lea.sflag [#allocation11], %s387
          %s389 = sand.u32 %s138, 1
          %s390 = smul.addr %s389, 8
          %s391 = scalar_lea.vmem [#allocation10], %s390
          %392 = dma.done %s388, 128
        $region72: #{tpu_custom_call.1} parent=63 // pred_fallthru
          _
      $region64: #{tpu_custom_call.1} parent=5 // pred_fallthru
        _
    $region6: #{tpu_custom_call.1} parent=1 // loop_footer
      %s26 = sadd.s32 1, %s22
    $region7: #{tpu_custom_call.1} parent=1 // loop_footer_branch
      %21 = sbr.rel target = $region3
    $region8: #{tpu_custom_call.1} parent=1 // loop_exit
      _
    %393 = vsyncpa [#allocation5], 1
    %s394 = scalar_lea.sflag [#allocation5], 1
    %395 = vsyncpa %s394, 1
    %396 = vsyncpa [#allocation8], 1
    %s397 = scalar_lea.sflag [#allocation8], 1
    %398 = vsyncpa %s397, 1
    %399 = vsyncpa [#allocation6], 1
    %s400 = scalar_lea.sflag [#allocation6], 1
    %401 = vsyncpa %s400, 1
    %402 = vsyncpa [#allocation11], 1
    %s403 = scalar_lea.sflag [#allocation11], 1
    %404 = vsyncpa %s403, 1

</llo_original>
